<compile_context>
chip_gen: v7x
topology: tpu7x:2x2x1
jax: 0.10.0
libtpu: 0.0.40
codegen_flags: <defaults>
</compile_context>

<pallas_src>
import functools

import jax
import jax.numpy as jnp
from jax.experimental import pallas as pl
from jax.experimental.pallas import tpu as pltpu


def _round_up(x, m):
    return ((x + m - 1) // m) * m


def _cdiv(a, b):
    return (a + b - 1) // b


def _vmem_capacity_bytes():
    """Physical VMEM bytes of the attached chip; conservative fallback."""
    try:
        info = pltpu.get_tpu_info()
        cap = getattr(info, "vmem_capacity_bytes", None)
        if cap:
            return int(cap)
    except Exception:
        pass
    return 64 * 1024 * 1024  # v7x-sized conservative default


def _store_lane_dense_partial(partial_ref, tile_sum):
    """Write a scalar into lane 0 of a (1, 1, 128) lane-dense output block."""
    lane_ids = jax.lax.broadcasted_iota(jnp.int32, (1, 1, 128), 2)
    partial_ref[...] = jnp.where(lane_ids == 0, tile_sum, 0.0).astype(jnp.float32)


def _ce_single_tile_kernel(logits_ref, tgt_ref, partial_ref, *,
                           tn, tc, c, n_valid, mask_cols, mask_rows):
    """One row tile, whole class axis in a single block (C <= tc)."""
    ni = pl.program_id(0)

    logits = logits_ref[...].astype(jnp.float32)          # (tn, tc)
    if mask_cols:  # ragged class block: mask garbage columns to -inf
        col_ids = jax.lax.broadcasted_iota(jnp.int32, (tn, tc), 1)
        logits = jnp.where(col_ids < c, logits, -jnp.inf)

    m = jnp.max(logits, axis=-1, keepdims=True)            # (tn, 1)
    l = jnp.sum(jnp.exp(logits - m), axis=-1, keepdims=True)
    per_example = (m + jnp.log(l)) - tgt_ref[...]          # lse - target logit

    if mask_rows:  # ragged row block: drop garbage rows from the sum
        row_ids = jax.lax.broadcasted_iota(jnp.int32, (tn, 1), 0) + ni * tn
        per_example = jnp.where(row_ids < n_valid, per_example, 0.0)

    _store_lane_dense_partial(partial_ref, jnp.sum(per_example))


def _ce_stream_kernel(logits_ref, tgt_ref, partial_ref, m_sc, l_sc, *,
                      tn, tc, c, n_valid, mask_cols, mask_rows):
    """Streaming online-logsumexp over class tiles (C > tc)."""
    ni = pl.program_id(0)
    ci = pl.program_id(1)

    @pl.when(ci == 0)
    def _init():
        m_sc[...] = jnp.full_like(m_sc, -jnp.inf)
        l_sc[...] = jnp.zeros_like(l_sc)

    logits = logits_ref[...].astype(jnp.float32)            # (tn, tc)
    if mask_cols:  # only the last class tile is ragged; local iota vs (c - ci*tc)
        col_ids = jax.lax.broadcasted_iota(jnp.int32, (tn, tc), 1)
        logits = jnp.where(col_ids < c - ci * tc, logits, -jnp.inf)

    m_prev = m_sc[...]
    m_new = jnp.maximum(m_prev, jnp.max(logits, axis=-1, keepdims=True))
    # Guard: if a row is entirely -inf (only possible if the caller feeds -inf
    # logits), keep exp(-inf - -inf) = NaN out of the running sum.
    alpha = jnp.where(m_new == -jnp.inf, 0.0, jnp.exp(m_prev - m_new))
    l_sc[...] = (l_sc[...] * alpha
                 + jnp.sum(jnp.exp(logits - m_new), axis=-1, keepdims=True))
    m_sc[...] = m_new

    @pl.when(ci == pl.num_programs(1) - 1)
    def _finalize():
        lse = m_sc[...] + jnp.log(l_sc[...])                 # (tn, 1)
        per_example = lse - tgt_ref[...]
        if mask_rows:
            row_ids = jax.lax.broadcasted_iota(jnp.int32, (tn, 1), 0) + ni * tn
            per_example = jnp.where(row_ids < n_valid, per_example, 0.0)
        _store_lane_dense_partial(partial_ref, jnp.sum(per_example))


def cross_entropy_loss(logits, targets, *,
                       max_class_tile=8192,
                       max_row_tile=2048,
                       logits_bytes_per_buffer=None,
                       vmem_limit_bytes=None):
    """logits: (N, C) float; targets: (N,) or (N, 1) integer class ids.

    Returns scalar f32 mean cross-entropy (== nn.CrossEntropyLoss default).
    """
    if targets.ndim == 2:
        targets = targets[:, 0]
    targets = targets.astype(jnp.int32)
    n, c = logits.shape

    # Hoisted target-logit gather: tiny N-element HBM gather in XLA, gathered
    # in the native dtype (no full-tensor f32 copy), upcast on the result only.
    tgt_logit = jnp.take_along_axis(logits, targets[:, None],
                                    axis=1).astype(jnp.float32)   # (n, 1)

    itemsize = jnp.dtype(logits.dtype).itemsize
    sublane = max(8, 32 // itemsize)            # 8 f32 / 16 bf16 / 32 int8

    # ---- class-axis tiling: lane-dense, multiple of 128, no wrapper padding.
    tc_cap = max(128, (max_class_tile // 128) * 128)
    tc = min(_round_up(c, 128), tc_cap)

    # ---- generation-aware buffer / VMEM-limit sizing ----------------------
    vmem_cap = _vmem_capacity_bytes()
    big_vmem = vmem_cap >= 100 * 1024 * 1024    # v5e/v6e: 128 MiB physical
    if logits_bytes_per_buffer is None:
        logits_bytes_per_buffer = (12 if big_vmem else 8) * 1024 * 1024
    if vmem_limit_bytes is None:
        vmem_limit_bytes = (64 if big_vmem else 44) * 1024 * 1024

    # ---- row-axis tiling ---------------------------------------------------
    tn = logits_bytes_per_buffer // (tc * itemsize)
    tn = max(sublane, min(max_row_tile, (tn // sublane) * sublane))
    # At least two row tiles whenever N allows it, so the "parallel" row axis
    # shards across v7x's two TensorCores (negligible cost on 1-TC chips).
    if n >= 2 * sublane:
        tn = min(tn, _round_up(_cdiv(n, 2), sublane))
    tn = min(tn, _round_up(n, sublane))

    n_tiles = _cdiv(n, tn)
    c_tiles = _cdiv(c, tc)
    mask_rows = (n % tn) != 0

    if c_tiles == 1:
        # Specialized path: whole class axis fits in one tile per row block.
        kernel = functools.partial(
            _ce_single_tile_kernel, tn=tn, tc=tc, c=c, n_valid=n,
            mask_cols=(tc != c), mask_rows=mask_rows)
        partials = pl.pallas_call(
            kernel,
            out_shape=jax.ShapeDtypeStruct((n_tiles, 1, 128), jnp.float32),
            grid=(n_tiles,),
            in_specs=[
                pl.BlockSpec((tn, tc), lambda ni: (ni, 0)),
                pl.BlockSpec((tn, 1), lambda ni: (ni, 0)),
            ],
            out_specs=pl.BlockSpec((1, 1, 128), lambda ni: (ni, 0, 0)),
            compiler_params=pltpu.CompilerParams(
                dimension_semantics=("parallel",),
                vmem_limit_bytes=vmem_limit_bytes,
            ),
        )(logits, tgt_logit)
    else:
        # Streaming online-logsumexp over class tiles.
        kernel = functools.partial(
            _ce_stream_kernel, tn=tn, tc=tc, c=c, n_valid=n,
            mask_cols=(c % tc) != 0, mask_rows=mask_rows)
        partials = pl.pallas_call(
            kernel,
            out_shape=jax.ShapeDtypeStruct((n_tiles, 1, 128), jnp.float32),
            grid=(n_tiles, c_tiles),
            in_specs=[
                pl.BlockSpec((tn, tc), lambda ni, ci: (ni, ci)),
                pl.BlockSpec((tn, 1), lambda ni, ci: (ni, 0)),
            ],
            out_specs=pl.BlockSpec((1, 1, 128), lambda ni, ci: (ni, 0, 0)),
            scratch_shapes=[
                pltpu.VMEM((tn, 1), jnp.float32),   # running max m
                pltpu.VMEM((tn, 1), jnp.float32),   # running sum l
            ],
            compiler_params=pltpu.CompilerParams(
                dimension_semantics=("parallel", "arbitrary"),
                vmem_limit_bytes=vmem_limit_bytes,
            ),
        )(logits, tgt_logit)

    # Final tiny reduction + single divide by the *global* batch size.
    return jnp.sum(partials) / jnp.float32(n)


class Loss:
    """JAX/Pallas equivalent of the PyTorch Loss module."""

    def __call__(self, output, target0):
        target = target0['class']              # (N, 1) class indices
        # .to(device) in the PyTorch module is a no-op here.
        return cross_entropy_loss(output, jnp.squeeze(target, axis=1))


def _ref_loss(logits, classes):
    lf = logits.astype(jnp.float32)
    return jnp.mean(
        jax.nn.logsumexp(lf, axis=-1)
        - jnp.take_along_axis(lf, classes, axis=1)[:, 0]
    )


if __name__ == "__main__":
    key = jax.random.PRNGKey(0)
    k1, k2, k3, k4, k5, k6 = jax.random.split(key, 6)

    # --- test 1: module-sized toy case (single class tile, single row tile) -
    N, C = 8, 32
    logits = jax.random.normal(k1, (N, C), dtype=jnp.float32)
    classes = jax.random.randint(k2, (N, 1), 0, C, dtype=jnp.int32)
    loss = jax.block_until_ready(Loss()(logits, {'class': classes}))
    ref = _ref_loss(logits, classes)
    assert jnp.allclose(loss, ref, atol=1e-4, rtol=1e-4), (loss, ref)

    # --- test 2: streaming path, ragged rows AND ragged class tiles ---------
    N2, C2 = 90, 200
    logits2 = jax.random.normal(k3, (N2, C2), dtype=jnp.float32)
    classes2 = jax.random.randint(k4, (N2, 1), 0, C2, dtype=jnp.int32)
    loss2 = jax.block_until_ready(
        cross_entropy_loss(logits2, classes2,
                           max_class_tile=128, max_row_tile=32))
    ref2 = _ref_loss(logits2, classes2)
    assert jnp.allclose(loss2, ref2, atol=1e-4, rtol=1e-4), (loss2, ref2)

    # --- test 3: bf16 logits (16-sublane rounding), single-tile ragged path -
    N3, C3 = 48, 300
    logits3 = jax.random.normal(k5, (N3, C3), dtype=jnp.float32).astype(jnp.bfloat16)
    classes3 = jax.random.randint(k6, (N3, 1), 0, C3, dtype=jnp.int32)
    loss3 = jax.block_until_ready(cross_entropy_loss(logits3, classes3))
    ref3 = _ref_loss(logits3, classes3)
    assert jnp.allclose(loss3, ref3, atol=2e-3, rtol=2e-3), (loss3, ref3)

    print("KERNEL_OK")
</pallas_src>

<mosaic_0001>
module attributes {stable_mosaic.version = 11 : i64} {
  func.func @_ce_single_tile_kernel(%arg0: i32, %arg1: memref<8x128xf32, #tpu.memory_space<vmem>>, %arg2: memref<8x1xf32, #tpu.memory_space<vmem>>, %arg3: memref<1x1x128xf32, #tpu.memory_space<vmem>>) attributes {dimension_semantics = [#tpu.dimension_semantics<parallel>], iteration_bounds = array<i64: 1>, scalar_prefetch = 0 : i64, scratch_operands = 0 : i64, tpu.core_type = #tpu.core_type<tc>, window_params = [{transform_indices = @transform_0, window_bounds = array<i64: 8, 128>}, {transform_indices = @transform_1, window_bounds = array<i64: 8, 1>}, {transform_indices = @transform_2, window_bounds = array<i64: 1, 1, 128>}]} {
    %c0 = arith.constant 0 : index
    %c0_0 = arith.constant 0 : index
    %0 = vector.load %arg1[%c0, %c0_0] : memref<8x128xf32, #tpu.memory_space<vmem>>, vector<8x128xf32>
    %1 = tpu.iota {dimensions = array<i32: 1>} : vector<8x128xi32>
    %c32_i32 = arith.constant 32 : i32
    %2 = vector.broadcast %c32_i32 : i32 to vector<8x128xi32>
    %3 = arith.cmpi slt, %1, %2 : vector<8x128xi32>
    %cst = arith.constant 0xFF800000 : f32
    %4 = vector.broadcast %cst : f32 to vector<8x128xf32>
    %5 = arith.select %3, %0, %4 : vector<8x128xi1>, vector<8x128xf32>
    %cst_1 = arith.constant dense<0xFF800000> : vector<8xf32>
    %6 = vector.multi_reduction <maximumf>, %5, %cst_1 [1] : vector<8x128xf32> to vector<8xf32>
    %7 = vector.shape_cast %6 : vector<8xf32> to vector<8x1xf32>
    %8 = vector.broadcast %7 : vector<8x1xf32> to vector<8x128xf32>
    %9 = arith.subf %5, %8 : vector<8x128xf32>
    %10 = math.exp %9 : vector<8x128xf32>
    %cst_2 = arith.constant dense<0.000000e+00> : vector<8xf32>
    %11 = vector.multi_reduction <add>, %10, %cst_2 [1] : vector<8x128xf32> to vector<8xf32>
    %12 = vector.shape_cast %11 : vector<8xf32> to vector<8x1xf32>
    %13 = math.log %12 : vector<8x1xf32>
    %14 = arith.addf %7, %13 : vector<8x1xf32>
    %c0_3 = arith.constant 0 : index
    %c0_4 = arith.constant 0 : index
    %15 = vector.load %arg2[%c0_3, %c0_4] : memref<8x1xf32, #tpu.memory_space<vmem>>, vector<8x1xf32>
    %16 = arith.subf %14, %15 : vector<8x1xf32>
    %17 = vector.shape_cast %16 : vector<8x1xf32> to vector<1x8x1xf32>
    %cst_5 = arith.constant dense<0.000000e+00> : vector<1xf32>
    %18 = vector.multi_reduction <add>, %17, %cst_5 [1, 2] : vector<1x8x1xf32> to vector<1xf32>
    %19 = vector.shape_cast %18 : vector<1xf32> to vector<1x1x1xf32>
    %20 = vector.extract %19[0, 0, 0] : f32 from vector<1x1x1xf32>
    %21 = tpu.iota {dimensions = array<i32: 2>} : vector<1x1x128xi32>
    %c0_i32 = arith.constant 0 : i32
    %22 = vector.broadcast %c0_i32 : i32 to vector<1x1x128xi32>
    %23 = arith.cmpi eq, %21, %22 : vector<1x1x128xi32>
    %cst_6 = arith.constant 0.000000e+00 : f32
    %24 = vector.broadcast %20 : f32 to vector<1x1x128xf32>
    %25 = vector.broadcast %cst_6 : f32 to vector<1x1x128xf32>
    %26 = arith.select %23, %24, %25 : vector<1x1x128xi1>, vector<1x1x128xf32>
    %c0_7 = arith.constant 0 : index
    %c0_8 = arith.constant 0 : index
    %c0_9 = arith.constant 0 : index
    %27 = vector.load %arg3[%c0_7, %c0_8, %c0_9] : memref<1x1x128xf32, #tpu.memory_space<vmem>>, vector<1x1x128xf32>
    tpu.vector_store %arg3[%c0_7, %c0_8, %c0_9], %26 {strides = array<i32>} : memref<1x1x128xf32, #tpu.memory_space<vmem>>, vector<1x1x128xf32>,
    return
  }
  func.func @transform_0(%arg0: i32) -> (i32, i32) {
    %c0_i32 = arith.constant 0 : i32
    %c0_i32_0 = arith.constant 0 : i32
    return %arg0, %c0_i32 : i32, i32
  }
  func.func @transform_1(%arg0: i32) -> (i32, i32) {
    %c0_i32 = arith.constant 0 : i32
    %c0_i32_0 = arith.constant 0 : i32
    return %arg0, %c0_i32 : i32, i32
  }
  func.func @transform_2(%arg0: i32) -> (i32, i32, i32) {
    %c0_i32 = arith.constant 0 : i32
    %c0_i32_0 = arith.constant 0 : i32
    %c0_i32_1 = arith.constant 0 : i32
    return %arg0, %c0_i32, %c0_i32_0 : i32, i32, i32
  }
}

</mosaic_0001>

<llo_original>
// kernel: tpu_custom_call.1
$region0: #{tpu_custom_call.1}
  #allocation0 [shape = 'u32[]', space=smem, size = 0x4, offset = 0x4, fixed_abs, tag = 'smem constant byte address 0x4 - core index']
  #allocation1 [shape = 'u32[144,128]{1,0:T(1,128)}', space=vmem, size = 0x12000, scoped, tag = 'internal scratch']
  %s0 = inlined_call_operand.vmem [shape: f32[8,32], index: 0, kind: input, shape index: {}]
  %s1 = inlined_call_operand.vmem [shape: f32[8,1], index: 1, kind: input, shape index: {}]
  %s2 = inlined_call_operand.hbm [shape: f32[1,1,128], index: 2, kind: output, shape index: {}]
  %s3 = sld [smem:[#allocation0]]
  $region18: #{tpu_custom_call.1} parent=0
    _
  %s5 = ssub.s32 1, %s3
  %s6 = scalar_select 0, %s5, %s3
  $region1: #{tpu_custom_call.1} parent=0
    #allocation2 [shape = 'u8[512]{0}', space=vmem, size = 0x400, scoped, tag = 'output window, operand 0, single buffered']
    #allocation3 [shape = 's32[1]{0}', space=sflag, size = 0x4, scoped, tag = 'scoped memory for tpu_custom_call.1']
    %7 = vsyncpa [#allocation3], 0
    // Predicated region
    $region2: #{tpu_custom_call.1} parent=1 // pred_check
      _
    $region3: #{tpu_custom_call.1} parent=1 // pred_check_branch
      %9 = sbr.rel (0) target = $region5
    $region4: #{tpu_custom_call.1} parent=1 // pred_region
      _
    $region5: #{tpu_custom_call.1} parent=1 // pred_fallthru
      _
    // Predicated region
    $region6: #{tpu_custom_call.1} parent=1 // pred_check
      _
    $region7: #{tpu_custom_call.1} parent=1 // pred_check_branch
      %11 = sbr.rel (0) target = $region9
    $region8: #{tpu_custom_call.1} parent=1 // pred_region
      _
    $region9: #{tpu_custom_call.1} parent=1 // pred_fallthru
      _
    %v12 = vld [vmem:[%s0] sm:$0xff]
    %v13 = vlaneseq
    %v14 = vand.u32 %v13, 127
    %vm15 = vcmp.lt.s32.totalorder %v14, 32
    %v16 = vsel %vm15, %v12, -inf
    %17 = vmax.xlane.f32.xlu0 %v16
    %v18 = vpop.xlane.xlu0 %17
    %v19 = vsub.f32 %v16, %v18
    %v20 = vmul.f32 %v19, 1.442695
    %v21 = vpow.pop %v20
    %22 = vadd.xlane.f32.xlu0 %v21
    %v23 = vpop.xlane.xlu0 %22
    %v24 = vlog2.pop %v23
    %v25 = vmul.f32 %v24, 0.6931472
    %v26 = vadd.f32 %v18, %v25
    %v27 = vld [vmem:[%s1] sm:$0xff]
    %v28 = vsub.f32 %v26, %v27
    %vm29 = vcmask 7168
    %v30 = vsel %vm29, %v28, 0.0
    %31 = vadd.xlane.f32.xlu0 %v30
    %v32 = vpop.xlane.xlu0 %31
    %v33 = vrot.slane %v32, 4
    %v34 = vadd.f32 %v32, %v33
    %v35 = vrot.slane %v34, 2
    %v36 = vadd.f32 %v34, %v35
    %v37 = vrot.slane %v36, 1
    %v38 = vadd.f32 %v36, %v37
    %s39 = vtos %v38
    %vm40 = vcmp.eq.s32.totalorder %v14, 0
    %v41 = vstv %s39
    %v42 = vsel %vm40, %v41, 0.0
    %43 = vst [vmem:[#allocation2] sm:$0x1] %v42
    // Predicated region
    $region10: #{tpu_custom_call.1} parent=1 // pred_check
      _
    $region11: #{tpu_custom_call.1} parent=1 // pred_check_branch
      %45 = sbr.rel (0) target = $region13
    $region12: #{tpu_custom_call.1} parent=1 // pred_region
      %s47 = ssub.s32 16, 16
      %48 = vsyncadd [#allocation3], %s47
      %s50 = sshll.u32 [#allocation2], 4
      %s51 = int_to_ptr.vmem [resolvable:$true] %s50
      %53 = dma.vmem_to_hbm [thread:$0]  %s51, 16, %s2, [#allocation3]
    $region13: #{tpu_custom_call.1} parent=1 // pred_fallthru
      _
    // Predicated region
    $region14: #{tpu_custom_call.1} parent=1 // pred_check
      _
    $region15: #{tpu_custom_call.1} parent=1 // pred_check_branch
      %55 = sbr.rel (0) target = $region17
    $region16: #{tpu_custom_call.1} parent=1 // pred_region
      %56 = dma.done [#allocation3], 16
    $region17: #{tpu_custom_call.1} parent=1 // pred_fallthru
      _
    %57 = vsyncpa [#allocation3], 1

</llo_original>
